<compile_context>
chip_gen: v7x
topology: tpu7x:2x2x1
jax: 0.10.0
libtpu: 0.0.40
codegen_flags: <defaults>
</compile_context>

<pallas_src>
import functools

import jax
import jax.numpy as jnp
from jax.experimental import pallas as pl
from jax.experimental.pallas import tpu as pltpu

HIDDEN_DIM = 16
WIDTH = 15
HEIGHT = 25                      # input / output feature dim
H2 = WIDTH * HIDDEN_DIM          # 240
H2_PAD = 256                     # 240 -> 2*128 lanes
OUT_PAD = 128                    # 25  -> 128 lanes (lane-dense output block)
TB_MAX = 2048                    # max batch tile (raised per perf review)
TB_ALIGN = 16                    # keep tiles sublane-pack friendly (bf16: 16 rows)


def _round_up(n, m):
    return (n + m - 1) // m * m


def _choose_tiles(B):
    """Pick (TB, Bp, n_tiles): balanced tiles, minimal padding, >=2 (even) steps
    for v7x megacore when B is large enough that splitting doesn't just add pad."""
    n_tiles = pl.cdiv(B, TB_MAX)
    if B >= 2 * TB_ALIGN and n_tiles < 2:
        n_tiles = 2
    if n_tiles > 1 and (n_tiles % 2):
        n_tiles += 1
    TB = _round_up(pl.cdiv(B, n_tiles), TB_ALIGN)
    Bp = TB * n_tiles
    return TB, Bp, n_tiles


def _mlp_kernel(x_ref, w1_ref, b1_ref, w2_ref, b2_ref, w3_ref, b3_ref, o_ref):
    # In-kernel bf16 cast of x (saves a wrapper-side HBM pass).
    x = x_ref[...].astype(jnp.bfloat16)
    # fc1 + relu1 (bf16 matmul, f32 accumulate, f32 epilogue)
    h1 = jnp.dot(x, w1_ref[...], preferred_element_type=jnp.float32)
    h1 = jnp.maximum(h1 + b1_ref[...], 0.0).astype(jnp.bfloat16)
    # fc2 + relu2 (padded to 256 output lanes; padded cols are exactly zero)
    h2 = jnp.dot(h1, w2_ref[...], preferred_element_type=jnp.float32)
    h2 = jnp.maximum(h2 + b2_ref[...], 0.0).astype(jnp.bfloat16)
    # fc3 (padded to 128 output lanes -> unmasked, lane-dense stores); bf16 writeback
    h3 = jnp.dot(h2, w3_ref[...], preferred_element_type=jnp.float32)
    o_ref[...] = (h3 + b3_ref[...]).astype(o_ref.dtype)


def prepare_params(params):
    """One-time pad+cast of the weights/biases (hoisted out of the forward path).
    Weights stored as (in, out); pads are zero -> padded math is exact."""
    return {
        "w1": params["w1"].astype(jnp.bfloat16),                                       # (25, 16)
        "b1": params["b1"].astype(jnp.float32),                                        # (1, 16)
        "w2": jnp.pad(params["w2"], ((0, 0), (0, H2_PAD - H2))).astype(jnp.bfloat16),  # (16, 256)
        "b2": jnp.pad(params["b2"], ((0, 0), (0, H2_PAD - H2))).astype(jnp.float32),   # (1, 256)
        "w3": jnp.pad(params["w3"], ((0, H2_PAD - H2), (0, OUT_PAD - HEIGHT))).astype(jnp.bfloat16),  # (256, 128)
        "b3": jnp.pad(params["b3"], ((0, 0), (0, OUT_PAD - HEIGHT))).astype(jnp.float32),             # (1, 128)
    }


def mlp_forward(x, prep):
    """x: (B, HEIGHT) float32. prep: output of prepare_params."""
    B = x.shape[0]
    TB, Bp, n_tiles = _choose_tiles(B)

    xp = x if Bp == B else jnp.pad(x, ((0, Bp - B), (0, 0)))

    x_spec = pl.BlockSpec((TB, HEIGHT), lambda i: (i, 0))
    const = lambda a: pl.BlockSpec(a.shape, lambda i: (0, 0))   # VMEM-resident across steps
    out_spec = pl.BlockSpec((TB, OUT_PAD), lambda i: (i, 0))

    w1, b1 = prep["w1"], prep["b1"]
    w2, b2 = prep["w2"], prep["b2"]
    w3, b3 = prep["w3"], prep["b3"]

    flops = 2 * Bp * (HEIGHT * HIDDEN_DIM + HIDDEN_DIM * H2_PAD + H2_PAD * OUT_PAD)
    bytes_accessed = (
        xp.size * 4 + Bp * OUT_PAD * 2
        + (w1.size + w2.size + w3.size) * 2
        + (b1.size + b2.size + b3.size) * 4
    )

    out = pl.pallas_call(
        _mlp_kernel,
        out_shape=jax.ShapeDtypeStruct((Bp, OUT_PAD), jnp.bfloat16),
        grid=(n_tiles,),
        in_specs=[x_spec, const(w1), const(b1), const(w2), const(b2), const(w3), const(b3)],
        out_specs=out_spec,
        compiler_params=pltpu.CompilerParams(
            dimension_semantics=("parallel",),
            vmem_limit_bytes=32 << 20,
        ),
        cost_estimate=pl.CostEstimate(
            flops=flops, transcendentals=0, bytes_accessed=bytes_accessed
        ),
    )(xp, w1, b1, w2, b2, w3, b3)

    # Slice away batch / lane padding; return f32 to match the module's output dtype.
    return out[:B, :HEIGHT].astype(jnp.float32)


mlp_forward_jit = jax.jit(mlp_forward)


def init_params(key):
    """PyTorch nn.Linear default init (U[-1/sqrt(fan_in), 1/sqrt(fan_in)]).
    Weights stored transposed as (in_features, out_features)."""
    def linear(k, fan_in, fan_out):
        kw, kb = jax.random.split(k)
        bound = 1.0 / jnp.sqrt(jnp.float32(fan_in))
        w = jax.random.uniform(kw, (fan_in, fan_out), jnp.float32, -bound, bound)
        b = jax.random.uniform(kb, (1, fan_out), jnp.float32, -bound, bound)
        return w, b

    k1, k2, k3 = jax.random.split(key, 3)
    w1, b1 = linear(k1, HEIGHT, HIDDEN_DIM)              # fc1: 25 -> 16
    w2, b2 = linear(k2, HIDDEN_DIM, H2)                  # fc2: 16 -> 240
    w3, b3 = linear(k3, H2, HEIGHT)                      # fc3: 240 -> 25
    return {"w1": w1, "b1": b1, "w2": w2, "b2": b2, "w3": w3, "b3": b3}


def reference_forward(x, params):
    """Pure-JAX reference mirroring the kernel's precision (bf16 matmuls, f32 accum)."""
    xb = x.astype(jnp.bfloat16)
    w1 = params["w1"].astype(jnp.bfloat16)
    w2 = params["w2"].astype(jnp.bfloat16)
    w3 = params["w3"].astype(jnp.bfloat16)
    h1 = jnp.dot(xb, w1, preferred_element_type=jnp.float32) + params["b1"]
    h1 = jnp.maximum(h1, 0.0).astype(jnp.bfloat16)
    h2 = jnp.dot(h1, w2, preferred_element_type=jnp.float32) + params["b2"]
    h2 = jnp.maximum(h2, 0.0).astype(jnp.bfloat16)
    return jnp.dot(h2, w3, preferred_element_type=jnp.float32) + params["b3"]


if __name__ == "__main__":
    key = jax.random.PRNGKey(0)
    kx, kx2, kp = jax.random.split(key, 3)
    params = init_params(kp)
    prep = prepare_params(params)   # one-time pad+cast of weights/biases

    # Small test (single grid step, padded batch rows).
    B = 8
    x = jax.random.normal(kx, (B, HEIGHT), jnp.float32)
    out = jax.block_until_ready(mlp_forward_jit(x, prep))
    ref = reference_forward(x, params)
    assert out.shape == (B, HEIGHT)
    assert jnp.allclose(out, ref, atol=2e-2, rtol=2e-2)

    # Larger test exercising the multi-step (parallel / megacore) grid + padding.
    B2 = 600
    x2 = jax.random.normal(kx2, (B2, HEIGHT), jnp.float32)
    out2 = jax.block_until_ready(mlp_forward_jit(x2, prep))
    ref2 = reference_forward(x2, params)
    assert out2.shape == (B2, HEIGHT)
    assert jnp.allclose(out2, ref2, atol=2e-2, rtol=2e-2)

    print("KERNEL_OK")
</pallas_src>

<mosaic_0001>
module attributes {stable_mosaic.version = 11 : i64} {
  func.func @_mlp_kernel(%arg0: i32, %arg1: memref<16x25xf32, #tpu.memory_space<vmem>>, %arg2: memref<25x16xbf16, #tpu.memory_space<vmem>>, %arg3: memref<1x16xf32, #tpu.memory_space<vmem>>, %arg4: memref<16x256xbf16, #tpu.memory_space<vmem>>, %arg5: memref<1x256xf32, #tpu.memory_space<vmem>>, %arg6: memref<256x128xbf16, #tpu.memory_space<vmem>>, %arg7: memref<1x128xf32, #tpu.memory_space<vmem>>, %arg8: memref<16x128xbf16, #tpu.memory_space<vmem>>) attributes {dimension_semantics = [#tpu.dimension_semantics<parallel>], iteration_bounds = array<i64: 1>, scalar_prefetch = 0 : i64, scratch_operands = 0 : i64, tpu.core_type = #tpu.core_type<tc>, window_params = [{transform_indices = @transform_0, window_bounds = array<i64: 16, 25>}, {pipeline_mode = #tpu.pipeline_mode<synchronous>, transform_indices = @transform_1, window_bounds = array<i64: 25, 16>}, {pipeline_mode = #tpu.pipeline_mode<synchronous>, transform_indices = @transform_2, window_bounds = array<i64: 1, 16>}, {pipeline_mode = #tpu.pipeline_mode<synchronous>, transform_indices = @transform_3, window_bounds = array<i64: 16, 256>}, {pipeline_mode = #tpu.pipeline_mode<synchronous>, transform_indices = @transform_4, window_bounds = array<i64: 1, 256>}, {pipeline_mode = #tpu.pipeline_mode<synchronous>, transform_indices = @transform_5, window_bounds = array<i64: 256, 128>}, {pipeline_mode = #tpu.pipeline_mode<synchronous>, transform_indices = @transform_6, window_bounds = array<i64: 1, 128>}, {transform_indices = @transform_7, window_bounds = array<i64: 16, 128>}]} {
    %c0 = arith.constant 0 : index
    %c0_0 = arith.constant 0 : index
    %0 = vector.load %arg1[%c0, %c0_0] : memref<16x25xf32, #tpu.memory_space<vmem>>, vector<16x25xf32>
    %1 = arith.truncf %0 : vector<16x25xf32> to vector<16x25xbf16>
    %c0_1 = arith.constant 0 : index
    %c0_2 = arith.constant 0 : index
    %2 = vector.load %arg2[%c0_1, %c0_2] : memref<25x16xbf16, #tpu.memory_space<vmem>>, vector<25x16xbf16>
    %cst = arith.constant dense<0.000000e+00> : vector<16x16xf32>
    %3 = tpu.matmul %1, %2, %cst {dimension_numbers = #tpu.dot_dimension_numbers<[1], [0], [0], [1], [0, 0, 1, 1], [], []>} : vector<16x25xbf16>, vector<25x16xbf16>, vector<16x16xf32> -> vector<16x16xf32>
    %c0_3 = arith.constant 0 : index
    %c0_4 = arith.constant 0 : index
    %4 = vector.load %arg3[%c0_3, %c0_4] : memref<1x16xf32, #tpu.memory_space<vmem>>, vector<1x16xf32>
    %5 = vector.broadcast %4 : vector<1x16xf32> to vector<16x16xf32>
    %6 = arith.addf %3, %5 : vector<16x16xf32>
    %cst_5 = arith.constant 0.000000e+00 : f32
    %7 = vector.broadcast %cst_5 : f32 to vector<16x16xf32>
    %8 = arith.maximumf %6, %7 : vector<16x16xf32>
    %9 = arith.truncf %8 : vector<16x16xf32> to vector<16x16xbf16>
    %c0_6 = arith.constant 0 : index
    %c0_7 = arith.constant 0 : index
    %10 = vector.load %arg4[%c0_6, %c0_7] : memref<16x256xbf16, #tpu.memory_space<vmem>>, vector<16x256xbf16>
    %cst_8 = arith.constant dense<0.000000e+00> : vector<16x256xf32>
    %11 = tpu.matmul %9, %10, %cst_8 {dimension_numbers = #tpu.dot_dimension_numbers<[1], [0], [0], [1], [0, 0, 1, 1], [], []>} : vector<16x16xbf16>, vector<16x256xbf16>, vector<16x256xf32> -> vector<16x256xf32>
    %c0_9 = arith.constant 0 : index
    %c0_10 = arith.constant 0 : index
    %12 = vector.load %arg5[%c0_9, %c0_10] : memref<1x256xf32, #tpu.memory_space<vmem>>, vector<1x256xf32>
    %13 = vector.broadcast %12 : vector<1x256xf32> to vector<16x256xf32>
    %14 = arith.addf %11, %13 : vector<16x256xf32>
    %cst_11 = arith.constant 0.000000e+00 : f32
    %15 = vector.broadcast %cst_11 : f32 to vector<16x256xf32>
    %16 = arith.maximumf %14, %15 : vector<16x256xf32>
    %17 = arith.truncf %16 : vector<16x256xf32> to vector<16x256xbf16>
    %c0_12 = arith.constant 0 : index
    %c0_13 = arith.constant 0 : index
    %18 = vector.load %arg6[%c0_12, %c0_13] : memref<256x128xbf16, #tpu.memory_space<vmem>>, vector<256x128xbf16>
    %cst_14 = arith.constant dense<0.000000e+00> : vector<16x128xf32>
    %19 = tpu.matmul %17, %18, %cst_14 {dimension_numbers = #tpu.dot_dimension_numbers<[1], [0], [0], [1], [0, 0, 1, 1], [], []>} : vector<16x256xbf16>, vector<256x128xbf16>, vector<16x128xf32> -> vector<16x128xf32>
    %c0_15 = arith.constant 0 : index
    %c0_16 = arith.constant 0 : index
    %20 = vector.load %arg7[%c0_15, %c0_16] : memref<1x128xf32, #tpu.memory_space<vmem>>, vector<1x128xf32>
    %21 = vector.broadcast %20 : vector<1x128xf32> to vector<16x128xf32>
    %22 = arith.addf %19, %21 : vector<16x128xf32>
    %23 = arith.truncf %22 : vector<16x128xf32> to vector<16x128xbf16>
    %c0_17 = arith.constant 0 : index
    %c0_18 = arith.constant 0 : index
    %24 = vector.load %arg8[%c0_17, %c0_18] : memref<16x128xbf16, #tpu.memory_space<vmem>>, vector<16x128xbf16>
    tpu.vector_store %arg8[%c0_17, %c0_18], %23 {strides = array<i32>} : memref<16x128xbf16, #tpu.memory_space<vmem>>, vector<16x128xbf16>,
    return
  }
  func.func @transform_0(%arg0: i32) -> (i32, i32) {
    %c0_i32 = arith.constant 0 : i32
    %c0_i32_0 = arith.constant 0 : i32
    return %arg0, %c0_i32 : i32, i32
  }
  func.func @transform_1(%arg0: i32) -> (i32, i32) {
    %c0_i32 = arith.constant 0 : i32
    %c0_i32_0 = arith.constant 0 : i32
    %c0_i32_1 = arith.constant 0 : i32
    return %c0_i32, %c0_i32_0 : i32, i32
  }
  func.func @transform_2(%arg0: i32) -> (i32, i32) {
    %c0_i32 = arith.constant 0 : i32
    %c0_i32_0 = arith.constant 0 : i32
    %c0_i32_1 = arith.constant 0 : i32
    return %c0_i32, %c0_i32_0 : i32, i32
  }
  func.func @transform_3(%arg0: i32) -> (i32, i32) {
    %c0_i32 = arith.constant 0 : i32
    %c0_i32_0 = arith.constant 0 : i32
    %c0_i32_1 = arith.constant 0 : i32
    return %c0_i32, %c0_i32_0 : i32, i32
  }
  func.func @transform_4(%arg0: i32) -> (i32, i32) {
    %c0_i32 = arith.constant 0 : i32
    %c0_i32_0 = arith.constant 0 : i32
    %c0_i32_1 = arith.constant 0 : i32
    return %c0_i32, %c0_i32_0 : i32, i32
  }
  func.func @transform_5(%arg0: i32) -> (i32, i32) {
    %c0_i32 = arith.constant 0 : i32
    %c0_i32_0 = arith.constant 0 : i32
    %c0_i32_1 = arith.constant 0 : i32
    return %c0_i32, %c0_i32_0 : i32, i32
  }
  func.func @transform_6(%arg0: i32) -> (i32, i32) {
    %c0_i32 = arith.constant 0 : i32
    %c0_i32_0 = arith.constant 0 : i32
    %c0_i32_1 = arith.constant 0 : i32
    return %c0_i32, %c0_i32_0 : i32, i32
  }
  func.func @transform_7(%arg0: i32) -> (i32, i32) {
    %c0_i32 = arith.constant 0 : i32
    %c0_i32_0 = arith.constant 0 : i32
    return %arg0, %c0_i32 : i32, i32
  }
}

</mosaic_0001>

<llo_original>
// kernel: mlp_forward.1
$region0: #{mlp_forward.1}
  #allocation0 [shape = 'u32[]', space=smem, size = 0x4, offset = 0x4, fixed_abs, tag = 'smem constant byte address 0x4 - core index']
  #allocation1 [shape = 'u32[144,128]{1,0:T(1,128)}', space=vmem, size = 0x12000, scoped, tag = 'internal scratch']
  %s0 = inlined_call_operand.vmem [shape: f32[16,25], index: 0, kind: input, shape index: {}]
  %s1 = inlined_call_operand.vmem [shape: bf16[25,16], index: 1, kind: input, shape index: {}]
  %s2 = inlined_call_operand.vmem [shape: f32[1,16], index: 2, kind: input, shape index: {}]
  %s3 = inlined_call_operand.vmem [shape: bf16[16,256], index: 3, kind: input, shape index: {}]
  %s4 = inlined_call_operand.vmem [shape: f32[1,256], index: 4, kind: input, shape index: {}]
  %s5 = inlined_call_operand.hbm [shape: bf16[256,128], index: 5, kind: input, shape index: {}]
  %s6 = inlined_call_operand.vmem [shape: f32[1,128], index: 6, kind: input, shape index: {}]
  %s7 = inlined_call_operand.vmem [shape: bf16[16,128], index: 7, kind: output, shape index: {}]
  %s8 = sld [smem:[#allocation0]]
  $region42: #{mlp_forward.1} parent=0
    _
  %s10 = ssub.s32 1, %s8
  %s11 = scalar_select 0, %s10, %s8
  $region1: #{mlp_forward.1} parent=0
    #allocation2 [shape = 'u8[65536]{0}', space=vmem, size = 0x10000, scoped, tag = 'input window, operand 5, single buffered']
    #allocation3 [shape = 's32[1]{0}', space=sflag, size = 0x4, scoped, tag = 'scoped memory for mlp_forward.1']
    %12 = vsyncpa [#allocation3], 0
    // Predicated region
    $region2: #{mlp_forward.1} parent=1 // pred_check
      _
    $region3: #{mlp_forward.1} parent=1 // pred_check_branch
      %14 = sbr.rel (0) target = $region5
    $region4: #{mlp_forward.1} parent=1 // pred_region
      _
    $region5: #{mlp_forward.1} parent=1 // pred_fallthru
      _
    // Predicated region
    $region6: #{mlp_forward.1} parent=1 // pred_check
      _
    $region7: #{mlp_forward.1} parent=1 // pred_check_branch
      %16 = sbr.rel (0) target = $region9
    $region8: #{mlp_forward.1} parent=1 // pred_region
      _
    $region9: #{mlp_forward.1} parent=1 // pred_fallthru
      _
    // Predicated region
    $region10: #{mlp_forward.1} parent=1 // pred_check
      _
    $region11: #{mlp_forward.1} parent=1 // pred_check_branch
      %18 = sbr.rel (0) target = $region13
    $region12: #{mlp_forward.1} parent=1 // pred_region
      _
    $region13: #{mlp_forward.1} parent=1 // pred_fallthru
      _
    // Predicated region
    $region14: #{mlp_forward.1} parent=1 // pred_check
      _
    $region15: #{mlp_forward.1} parent=1 // pred_check_branch
      %20 = sbr.rel (0) target = $region17
    $region16: #{mlp_forward.1} parent=1 // pred_region
      _
    $region17: #{mlp_forward.1} parent=1 // pred_fallthru
      _
    // Predicated region
    $region18: #{mlp_forward.1} parent=1 // pred_check
      _
    $region19: #{mlp_forward.1} parent=1 // pred_check_branch
      %22 = sbr.rel (0) target = $region21
    $region20: #{mlp_forward.1} parent=1 // pred_region
      _
    $region21: #{mlp_forward.1} parent=1 // pred_fallthru
      _
    // Predicated region
    $region22: #{mlp_forward.1} parent=1 // pred_check
      _
    $region23: #{mlp_forward.1} parent=1 // pred_check_branch
      %24 = sbr.rel (0) target = $region25
    $region24: #{mlp_forward.1} parent=1 // pred_region
      %s26 = ssub.s32 2048, 2048
      %27 = vsyncadd [#allocation3], %s26
      %s28 = sshll.u32 [#allocation2], 4
      %s29 = int_to_ptr.vmem [resolvable:$true] %s28
      %34 = dma.hbm_to_vmem [thread:$0]  %s5, 2048, %s29, [#allocation3], 64, 64, 4
    $region25: #{mlp_forward.1} parent=1 // pred_fallthru
      _
    // Predicated region
    $region26: #{mlp_forward.1} parent=1 // pred_check
      _
    $region27: #{mlp_forward.1} parent=1 // pred_check_branch
      %36 = sbr.rel (0) target = $region29
    $region28: #{mlp_forward.1} parent=1 // pred_region
      _
    $region29: #{mlp_forward.1} parent=1 // pred_fallthru
      _
    // Predicated region
    $region30: #{mlp_forward.1} parent=1 // pred_check
      _
    $region31: #{mlp_forward.1} parent=1 // pred_check_branch
      %38 = sbr.rel (0) target = $region33
    $region32: #{mlp_forward.1} parent=1 // pred_region
      %39 = dma.done [#allocation3], 2048
    $region33: #{mlp_forward.1} parent=1 // pred_fallthru
      _
    %v41 = vld [vmem:[%s0] sm:$0xff]
    %v42 = vld [vmem:[%s0 + $0x8] sm:$0xff]
    %v43 = vpack.c.bf16 %v42, %v41
    %v44 = vld [vmem:[%s1] sm:$0xf]
    %v45 = vld [vmem:[%s1 + $0x4] sm:$0xf]
    %v46 = vld [vmem:[%s1 + $0x8] sm:$0xf]
    %v47 = vld [vmem:[%s1 + $0xc] sm:$0x1]
    %v48 = vld [vmem:[%s2] sm:$0x1]
    %v50 = vlaneseq
    %v51 = vshrl.u32 %v50, 7
    %v52 = vsub.s32 0, %v51
    %v53 = vrot.slane %v48, %v52
    %v59 = vunpack.c.l.b16 %v44
    %v60 = vunpack.c.l.b16 %v45
    %v61 = vunpack.c.l.b16 %v46
    %v62 = vunpack.c.l.b16 %v47
    %v63 = vpack.c.b16 %v60, %v59
    %v64 = vpack.c.b16 %v62, %v61
    %vm66 = vcmask 203776
    %v68 = vsel %vm66, %v43, 0
    %vm70 = vcmask 1043456
    %vm71 = vcmask 1044480
    %v72 = vsel %vm70, 4294967295, 65535
    %v73 = vsel %vm71, %v72, 0
    %v75 = vand.u32 %v64, %v73
    %77 = vmatprep.subr.bf16.mxu0 0
    %78 = vmatpush1.bf16.msra.mxu0 %v63
    %79 = vmatprep.subr.bf16.mxu0 0
    %80 = vmatpush1.bf16.msra.mxu0 %v75
    %81 = vmatprep.subr.bf16.mxu0 0
    %82 = vmatpush1.bf16.msra.mxu0 0
    %83 = vmatprep.subr.bf16.mxu0 0
    %84 = vmatpush1.bf16.msra.mxu0 0
    %85 = vmatprep.subr.bf16.mxu0 0
    %86 = vmatpush1.bf16.msra.mxu0 0
    %87 = vmatprep.subr.bf16.mxu0 0
    %88 = vmatpush1.bf16.msra.mxu0 0
    %89 = vmatprep.subr.bf16.mxu0 0
    %90 = vmatpush1.bf16.msra.mxu0 0
    %91 = vmatprep.subr.bf16.mxu0 0
    %92 = vmatpush1.bf16.msra.mxu0 0
    %93 = vmatprep.subr.bf16.mxu0 0
    %94 = vmatpush1.bf16.msra.mxu0 0
    %95 = vmatprep.subr.bf16.mxu0 0
    %96 = vmatpush1.bf16.msra.mxu0 0
    %97 = vmatprep.subr.bf16.mxu0 0
    %98 = vmatpush1.bf16.msra.mxu0 0
    %99 = vmatprep.subr.bf16.mxu0 0
    %100 = vmatpush1.bf16.msra.mxu0 0
    %101 = vmatprep.subr.bf16.mxu0 0
    %102 = vmatpush1.bf16.msra.mxu0 0
    %103 = vmatprep.subr.bf16.mxu0 0
    %104 = vmatpush1.bf16.msra.mxu0 0
    %105 = vmatprep.subr.bf16.mxu0 0
    %106 = vmatpush1.bf16.msra.mxu0 0
    %107 = vmatprep.subr.bf16.mxu0 0
    %108 = vmatpush1.bf16.msra.mxu0 0
    %109 = vmatprep.mubr.bf16.mxu0 0
    %110 = vmatmul.mubr.bf16.gmra.mrb[0].mxu0 %v68
    %v111 = vpop.f32.mrb[0].mxu0
    %v112 = vadd.f32 %v53, %v111
    %v113 = vpop.f32.mrb[0].mxu0
    %v114 = vpop.f32.mrb[0].mxu0
    %v115 = vadd.f32 %v53, %v114
    %v116 = vpop.f32.mrb[0].mxu0
    %117 = vdwg.mxu0
    %v118 = vmax.f32 %v112, 0.0
    %v119 = vmax.f32 %v115, 0.0
    %v120 = vpack.c.bf16 %v119, %v118
    %v121 = vld [vmem:[%s3] sm:$0xff]
    %v122 = vld [vmem:[%s3 + $0x8] sm:$0xff]
    %v123 = vld [vmem:[%s4] sm:$0x3]
    %v125 = vlaneseq
    %v126 = vshrl.u32 %v125, 7
    %v127 = vsub.s32 0, %v126
    %v128 = vrot.slane %v123, %v127
    %v129 = vlaneseq
    %v130 = vshrl.u32 %v129, 7
    %v131 = vsub.s32 1, %v130
    %v132 = vrot.slane %v123, %v131
    %v137 = vunpack.c.l.b16 %v121
    %v138 = vunpack.c.h.b16 %v121
    %v139 = vunpack.c.l.b16 %v122
    %v140 = vunpack.c.h.b16 %v122
    %v141 = vpack.c.b16 %v139, %v137
    %v142 = vpack.c.b16 %v140, %v138
    %vm145 = vcmask 130048
    %v147 = vsel %vm145, %v120, 0
    %149 = vmatprep.subr.bf16.mxu0 %v142
    %150 = vmatpush1.bf16.msra.mxu0 %v141
    %151 = vmatprep.subr.bf16.mxu0 0
    %152 = vmatpush1.bf16.msra.mxu0 0
    %153 = vmatprep.subr.bf16.mxu0 0
    %154 = vmatpush1.bf16.msra.mxu0 0
    %155 = vmatprep.subr.bf16.mxu0 0
    %156 = vmatpush1.bf16.msra.mxu0 0
    %157 = vmatprep.subr.bf16.mxu0 0
    %158 = vmatpush1.bf16.msra.mxu0 0
    %159 = vmatprep.subr.bf16.mxu0 0
    %160 = vmatpush1.bf16.msra.mxu0 0
    %161 = vmatprep.subr.bf16.mxu0 0
    %162 = vmatpush1.bf16.msra.mxu0 0
    %163 = vmatprep.subr.bf16.mxu0 0
    %164 = vmatpush1.bf16.msra.mxu0 0
    %165 = vmatprep.subr.bf16.mxu0 0
    %166 = vmatpush1.bf16.msra.mxu0 0
    %167 = vmatprep.subr.bf16.mxu0 0
    %168 = vmatpush1.bf16.msra.mxu0 0
    %169 = vmatprep.subr.bf16.mxu0 0
    %170 = vmatpush1.bf16.msra.mxu0 0
    %171 = vmatprep.subr.bf16.mxu0 0
    %172 = vmatpush1.bf16.msra.mxu0 0
    %173 = vmatprep.subr.bf16.mxu0 0
    %174 = vmatpush1.bf16.msra.mxu0 0
    %175 = vmatprep.subr.bf16.mxu0 0
    %176 = vmatpush1.bf16.msra.mxu0 0
    %177 = vmatprep.subr.bf16.mxu0 0
    %178 = vmatpush1.bf16.msra.mxu0 0
    %179 = vmatprep.subr.bf16.mxu0 0
    %180 = vmatpush1.bf16.msra.mxu0 0
    %181 = vmatprep.mubr.bf16.mxu0 0
    %182 = vmatmul.mubr.bf16.gmra.mrb[0].mxu0 %v147
    %v183 = vpop.f32.mrb[0].mxu0
    %v184 = vadd.f32 %v128, %v183
    %v185 = vpop.f32.mrb[0].mxu0
    %v186 = vadd.f32 %v132, %v185
    %v187 = vpop.f32.mrb[0].mxu0
    %v188 = vadd.f32 %v128, %v187
    %v189 = vpop.f32.mrb[0].mxu0
    %v190 = vadd.f32 %v132, %v189
    %191 = vdwg.mxu0
    %v192 = vmax.f32 %v184, 0.0
    %v193 = vmax.f32 %v186, 0.0
    %v194 = vmax.f32 %v188, 0.0
    %v195 = vmax.f32 %v190, 0.0
    %v196 = vpack.c.bf16 %v194, %v192
    %v197 = vpack.c.bf16 %v195, %v193
    %v198 = vld [vmem:[#allocation2] sm:$0xf]
    %v199 = vld [vmem:[#allocation2 + $0x4] sm:$0xf]
    %v200 = vld [vmem:[#allocation2 + $0x8] sm:$0xf]
    %v201 = vld [vmem:[#allocation2 + $0xc] sm:$0xf]
    %v202 = vld [vmem:[#allocation2 + $0x10] sm:$0xf]
    %v203 = vld [vmem:[#allocation2 + $0x14] sm:$0xf]
    %v204 = vld [vmem:[#allocation2 + $0x18] sm:$0xf]
    %v205 = vld [vmem:[#allocation2 + $0x1c] sm:$0xf]
    %v206 = vld [vmem:[#allocation2 + $0x20] sm:$0xf]
    %v207 = vld [vmem:[#allocation2 + $0x24] sm:$0xf]
    %v208 = vld [vmem:[#allocation2 + $0x28] sm:$0xf]
    %v209 = vld [vmem:[#allocation2 + $0x2c] sm:$0xf]
    %v210 = vld [vmem:[#allocation2 + $0x30] sm:$0xf]
    %v211 = vld [vmem:[#allocation2 + $0x34] sm:$0xf]
    %v212 = vld [vmem:[#allocation2 + $0x38] sm:$0xf]
    %v213 = vld [vmem:[#allocation2 + $0x3c] sm:$0xf]
    %v214 = vld [vmem:[#allocation2 + $0x40] sm:$0xf]
    %v215 = vld [vmem:[#allocation2 + $0x44] sm:$0xf]
    %v216 = vld [vmem:[#allocation2 + $0x48] sm:$0xf]
    %v217 = vld [vmem:[#allocation2 + $0x4c] sm:$0xf]
    %v218 = vld [vmem:[#allocation2 + $0x50] sm:$0xf]
    %v219 = vld [vmem:[#allocation2 + $0x54] sm:$0xf]
    %v220 = vld [vmem:[#allocation2 + $0x58] sm:$0xf]
    %v221 = vld [vmem:[#allocation2 + $0x5c] sm:$0xf]
    %v222 = vld [vmem:[#allocation2 + $0x60] sm:$0xf]
    %v223 = vld [vmem:[#allocation2 + $0x64] sm:$0xf]
    %v224 = vld [vmem:[#allocation2 + $0x68] sm:$0xf]
    %v225 = vld [vmem:[#allocation2 + $0x6c] sm:$0xf]
    %v226 = vld [vmem:[#allocation2 + $0x70] sm:$0xf]
    %v227 = vld [vmem:[#allocation2 + $0x74] sm:$0xf]
    %v228 = vld [vmem:[#allocation2 + $0x78] sm:$0xf]
    %v229 = vld [vmem:[#allocation2 + $0x7c] sm:$0xf]
    %v230 = vld [vmem:[%s6] sm:$0x1]
    %v232 = vlaneseq
    %v233 = vshrl.u32 %v232, 7
    %v234 = vsub.s32 0, %v233
    %v235 = vrot.slane %v230, %v234
    %v269 = vunpack.c.l.b16 %v198
    %v270 = vunpack.c.l.b16 %v199
    %v271 = vunpack.c.l.b16 %v200
    %v272 = vunpack.c.l.b16 %v201
    %v273 = vunpack.c.l.b16 %v202
    %v274 = vunpack.c.l.b16 %v203
    %v275 = vunpack.c.l.b16 %v204
    %v276 = vunpack.c.l.b16 %v205
    %v277 = vunpack.c.l.b16 %v206
    %v278 = vunpack.c.l.b16 %v207
    %v279 = vunpack.c.l.b16 %v208
    %v280 = vunpack.c.l.b16 %v209
    %v281 = vunpack.c.l.b16 %v210
    %v282 = vunpack.c.l.b16 %v211
    %v283 = vunpack.c.l.b16 %v212
    %v284 = vunpack.c.l.b16 %v213
    %v285 = vunpack.c.l.b16 %v214
    %v286 = vunpack.c.l.b16 %v215
    %v287 = vunpack.c.l.b16 %v216
    %v288 = vunpack.c.l.b16 %v217
    %v289 = vunpack.c.l.b16 %v218
    %v290 = vunpack.c.l.b16 %v219
    %v291 = vunpack.c.l.b16 %v220
    %v292 = vunpack.c.l.b16 %v221
    %v293 = vunpack.c.l.b16 %v222
    %v294 = vunpack.c.l.b16 %v223
    %v295 = vunpack.c.l.b16 %v224
    %v296 = vunpack.c.l.b16 %v225
    %v297 = vunpack.c.l.b16 %v226
    %v298 = vunpack.c.l.b16 %v227
    %v299 = vunpack.c.l.b16 %v228
    %v300 = vunpack.c.l.b16 %v229
    %v301 = vpack.c.b16 %v270, %v269
    %v302 = vpack.c.b16 %v272, %v271
    %v303 = vpack.c.b16 %v274, %v273
    %v304 = vpack.c.b16 %v276, %v275
    %v305 = vpack.c.b16 %v278, %v277
    %v306 = vpack.c.b16 %v280, %v279
    %v307 = vpack.c.b16 %v282, %v281
    %v308 = vpack.c.b16 %v284, %v283
    %v309 = vpack.c.b16 %v286, %v285
    %v310 = vpack.c.b16 %v288, %v287
    %v311 = vpack.c.b16 %v290, %v289
    %v312 = vpack.c.b16 %v292, %v291
    %v313 = vpack.c.b16 %v294, %v293
    %v314 = vpack.c.b16 %v296, %v295
    %v315 = vpack.c.b16 %v298, %v297
    %v316 = vpack.c.b16 %v300, %v299
    %333 = vmatprep.subr.bf16.mxu0 0
    %334 = vmatpush1.bf16.msra.mxu0 %v301
    %335 = vmatprep.subr.bf16.mxu0 0
    %336 = vmatpush1.bf16.msra.mxu0 %v302
    %337 = vmatprep.subr.bf16.mxu0 0
    %338 = vmatpush1.bf16.msra.mxu0 %v303
    %339 = vmatprep.subr.bf16.mxu0 0
    %340 = vmatpush1.bf16.msra.mxu0 %v304
    %341 = vmatprep.subr.bf16.mxu0 0
    %342 = vmatpush1.bf16.msra.mxu0 %v305
    %343 = vmatprep.subr.bf16.mxu0 0
    %344 = vmatpush1.bf16.msra.mxu0 %v306
    %345 = vmatprep.subr.bf16.mxu0 0
    %346 = vmatpush1.bf16.msra.mxu0 %v307
    %347 = vmatprep.subr.bf16.mxu0 0
    %348 = vmatpush1.bf16.msra.mxu0 %v308
    %349 = vmatprep.subr.bf16.mxu0 0
    %350 = vmatpush1.bf16.msra.mxu0 %v309
    %351 = vmatprep.subr.bf16.mxu0 0
    %352 = vmatpush1.bf16.msra.mxu0 %v310
    %353 = vmatprep.subr.bf16.mxu0 0
    %354 = vmatpush1.bf16.msra.mxu0 %v311
    %355 = vmatprep.subr.bf16.mxu0 0
    %356 = vmatpush1.bf16.msra.mxu0 %v312
    %357 = vmatprep.subr.bf16.mxu0 0
    %358 = vmatpush1.bf16.msra.mxu0 %v313
    %359 = vmatprep.subr.bf16.mxu0 0
    %360 = vmatpush1.bf16.msra.mxu0 %v314
    %361 = vmatprep.subr.bf16.mxu0 0
    %362 = vmatpush1.bf16.msra.mxu0 %v315
    %363 = vmatprep.subr.bf16.mxu0 0
    %364 = vmatpush1.bf16.msra.mxu0 %v316
    %365 = vmatprep.mubr.bf16.mxu0 %v197
    %366 = vmatmul.mubr.bf16.gmra.mrb[0].mxu0 %v196
    %v367 = vpop.f32.mrb[0].mxu0
    %v368 = vadd.f32 %v235, %v367
    %v369 = vpop.f32.mrb[0].mxu0
    %v370 = vpop.f32.mrb[0].mxu0
    %v371 = vadd.f32 %v235, %v370
    %v372 = vpop.f32.mrb[0].mxu0
    %373 = vdwg.mxu0
    %v374 = vpack.c.bf16 %v371, %v368
    %v376 = vunpack.c.l.b16 %v374
    %v377 = vunpack.c.h.b16 %v374
    %v378 = vpack.c.b16 %v376, %v376
    %v379 = vpack.c.b16 %v377, %v377
    %382 = vst [vmem:[%s7] sm:$0xf] %v378
    %383 = vst [vmem:[%s7 + $0x4] sm:$0xf] %v379
    // Predicated region
    $region34: #{mlp_forward.1} parent=1 // pred_check
      _
    $region35: #{mlp_forward.1} parent=1 // pred_check_branch
      %385 = sbr.rel (0) target = $region37
    $region36: #{mlp_forward.1} parent=1 // pred_region
      _
    $region37: #{mlp_forward.1} parent=1 // pred_fallthru
      _
    // Predicated region
    $region38: #{mlp_forward.1} parent=1 // pred_check
      _
    $region39: #{mlp_forward.1} parent=1 // pred_check_branch
      %387 = sbr.rel (0) target = $region41
    $region40: #{mlp_forward.1} parent=1 // pred_region
      _
    $region41: #{mlp_forward.1} parent=1 // pred_fallthru
      _
    %388 = vsyncpa [#allocation3], 1

</llo_original>
